<compile_context>
chip_gen: v5e
topology: v5e:2x2
jax: 0.10.0
libtpu: 0.0.40
codegen_flags: <defaults>
</compile_context>

<pallas_src>
import math

import jax
import jax.numpy as jnp
from jax.experimental import pallas as pl
from jax.experimental.pallas import tpu as pltpu


def _noise_injection_kernel(w_ref, img_ref, noise_ref, out_ref):
    # w_ref:            (1,) float32 scalar-prefetched weight (SMEM)
    # img_ref, out_ref: (1, TC, TW) VMEM tiles
    # noise_ref:        (1, 1, TW)  VMEM tile, broadcast over the channel (sublane) axis.
    # Compute in the image dtype: bf16/fp16 stay packed on v6e/v7x VALUs. The kernel is
    # HBM-DMA-bound, so the arithmetic is filler either way.
    w = w_ref[0].astype(img_ref.dtype)
    out_ref[...] = img_ref[...] + w * noise_ref[...]


def _divisors(n):
    ds = set()
    i = 1
    while i * i <= n:
        if n % i == 0:
            ds.add(i)
            ds.add(n // i)
        i += 1
    return sorted(ds)


def _default_tile_bytes():
    """Per-stream tile budget, sized by VMEM generation (v7x has only 64 MiB/TC)."""
    vmem = None
    try:
        vmem = getattr(pltpu.get_tpu_info(), "vmem_capacity_bytes", None)
    except Exception:
        vmem = None
    if vmem is not None and vmem <= 80 * 1024 * 1024:
        return 6 * 1024 * 1024     # v7x: keep ~4.5*tile well under 64 MiB/TC
    return 8 * 1024 * 1024         # v5e / v6e: 128 MiB VMEM, plenty of headroom


def _choose_tiles(B, Cp, L, itemsize, tile_bytes):
    """Pick (TC, TW): channel-chunk (sublane) and spatial-chunk (lane) tile sizes.

    Invariants: TW is a multiple of 128 (the wrapper guarantees 128 | L), and TC is either
    a multiple of the sublane pack (8 f32 / 16 bf16 / 32 int8) or exactly Cp, so the
    (8,128) block rule always holds and no fallback silently exceeds the budget.
    """
    sub = 8 * max(1, 4 // max(1, itemsize))                           # 8 f32, 16 bf16, 32 i8
    lane_cands = sorted(d for d in _divisors(L) if d % 128 == 0)      # nonempty: 128 | L
    chan_cands = sorted({d for d in _divisors(Cp) if d % sub == 0} | {Cp})

    want_c = min(sub, Cp)
    fit_tw = [d for d in lane_cands if d * want_c * itemsize <= tile_bytes]
    tw = max(fit_tw) if fit_tw else lane_cands[0]
    fit_tc = [d for d in chan_cands if d * tw * itemsize <= tile_bytes]
    if not fit_tc:
        tw = lane_cands[0]
        fit_tc = ([d for d in chan_cands if d * tw * itemsize <= tile_bytes]
                  or [chan_cands[0]])
    tc = max(fit_tc)

    # Megacore occupancy: prefer >= 2 grid steps when the problem can be split, so both
    # v7x TensorCores get work (all grid axes are marked "parallel").
    if B * (L // tw) * (Cp // tc) < 2:
        smaller_tw = [d for d in lane_cands if d < tw]
        smaller_tc = [d for d in chan_cands if d < tc]
        if smaller_tw:
            tw = max(smaller_tw)
        elif smaller_tc:
            tc = max(smaller_tc)
    return tc, tw


def noise_injection(image, weight, noise=None, *, key=None,
                    tile_bytes=None, vmem_limit_bytes=None):
    """StyleGAN NoiseInjection forward: image + weight * noise.

    image:  (B, C, H, W)
    weight: scalar / (1,) parameter (PyTorch init: torch.zeros(1))
    noise:  (B, 1, H, W) or None. If None, fresh normal noise is sampled; an explicit PRNG
            `key` is then required (silently reusing a fixed key would diverge from
            PyTorch's fresh torch.randn per forward call).

    Note: the add is computed in `image.dtype` (noise is cast to it). For a bf16 image with
    f32 noise, PyTorch type promotion would compute and return f32; here we stay in the
    image dtype by design (documented divergence, negligible for GAN noise injection).
    """
    B, C, H, W = image.shape
    if noise is None:
        if key is None:
            raise ValueError("noise=None requires an explicit PRNG `key`.")
        # TODO(synk): generate noise in-kernel (pltpu.prng_seed keyed on (batch,
        # spatial-chunk) + pltpu.prng_random_bits + Box-Muller) to skip one full HBM
        # write+read of the noise tensor on the noise=None path.
        noise = jax.random.normal(key, (B, 1, H, W), dtype=jnp.float32).astype(image.dtype)
    if noise.shape != (B, 1, H, W):
        raise ValueError(f"noise must have shape {(B, 1, H, W)}, got {noise.shape}")

    itemsize = jnp.dtype(image.dtype).itemsize
    if tile_bytes is None:
        tile_bytes = _default_tile_bytes()
    if vmem_limit_bytes is None:
        # image + out double-buffered (~4x tile) + tiny noise buffers + slack.
        vmem_limit_bytes = max(16 * 1024 * 1024, int(4.5 * tile_bytes) + (1 << 20))

    HW = H * W
    noise2 = noise.astype(image.dtype).reshape(B, 1, HW)

    # Lane-dense layout: make the last (lane) dim a multiple of 128 so stores are unmasked
    # full-width vst's. Prefer folding g channels into the lane axis (only duplicates the
    # tiny noise stream); fall back to zero-padding the lane dim if no valid g divides C.
    g, pad = 1, 0
    if HW % 128 != 0:
        g0 = 128 // math.gcd(HW, 128)          # smallest g with (g * HW) % 128 == 0
        cand = g0
        while cand <= C and C % cand != 0:
            cand += g0
        if cand <= C:
            g = cand
        else:
            pad = (-HW) % 128

    if g > 1:
        Cp, L = C // g, g * HW
        image2 = image.reshape(B, Cp, L)
        noise2 = jnp.tile(noise2, (1, 1, g))   # each folded channel gets the same HW noise
    else:
        Cp, L = C, HW + pad
        image2 = image.reshape(B, C, HW)
        if pad:
            image2 = jnp.pad(image2, ((0, 0), (0, 0), (0, pad)))
            noise2 = jnp.pad(noise2, ((0, 0), (0, 0), (0, pad)))

    weight_f32 = jnp.asarray(weight, dtype=jnp.float32).reshape((1,))
    tc, tw = _choose_tiles(B, Cp, L, itemsize, tile_bytes)
    grid = (B, L // tw, Cp // tc)              # channel-chunk axis innermost (noise reuse)

    grid_spec = pltpu.PrefetchScalarGridSpec(
        num_scalar_prefetch=1,                 # weight -> SMEM
        grid=grid,
        in_specs=[
            pl.BlockSpec((1, tc, tw), lambda b, s, c, wt: (b, c, s)),   # image
            pl.BlockSpec((1, 1, tw), lambda b, s, c, wt: (b, 0, s)),    # noise (reused over c)
        ],
        out_specs=pl.BlockSpec((1, tc, tw), lambda b, s, c, wt: (b, c, s)),
    )

    out2 = pl.pallas_call(
        _noise_injection_kernel,
        out_shape=jax.ShapeDtypeStruct((B, Cp, L), image.dtype),
        grid_spec=grid_spec,
        compiler_params=pltpu.CompilerParams(
            # Pure elementwise op (no accumulator), so every grid axis can be split
            # across v7x's two TensorCores.
            dimension_semantics=("parallel", "parallel", "parallel"),
            vmem_limit_bytes=vmem_limit_bytes,
        ),
    )(weight_f32, image2, noise2)

    if pad:
        out2 = out2[:, :, :HW]
    return out2.reshape(B, C, H, W)


if __name__ == "__main__":
    root = jax.random.PRNGKey(0)
    keys = jax.random.split(root, 10)

    # Case 1: module-spec shapes (B=2, C=4, H=W=16) — lane dim 256 (multiple of 128).
    B, C, H, W = 2, 4, 16, 16
    image = jax.random.normal(keys[0], (B, C, H, W), dtype=jnp.float32)
    noise = jax.random.normal(keys[1], (B, 1, H, W), dtype=jnp.float32)
    w_zero = jnp.zeros((1,), jnp.float32)          # nn.Parameter(torch.zeros(1)) init
    w_half = jnp.full((1,), 0.5, jnp.float32)

    out_zero = jax.block_until_ready(noise_injection(image, w_zero, noise))
    out_half = jax.block_until_ready(noise_injection(image, w_half, noise))
    assert jnp.allclose(out_zero, image, atol=1e-6), "weight=0 mismatch"
    assert jnp.allclose(out_half, image + 0.5 * noise, atol=1e-6), "weight=0.5 mismatch"

    # Case 2: sub-128 spatial (8x8) with many channels — exercises the channel->lane fold
    # (g=2, lane dim 128, unmasked stores).
    B2, C2, H2, W2 = 2, 64, 8, 8
    img2 = jax.random.normal(keys[2], (B2, C2, H2, W2), dtype=jnp.float32)
    noi2 = jax.random.normal(keys[3], (B2, 1, H2, W2), dtype=jnp.float32)
    out2 = jax.block_until_ready(noise_injection(img2, w_half, noi2))
    assert jnp.allclose(out2, img2 + 0.5 * noi2, atol=1e-6), "fold case mismatch"

    # Case 3: force small tiles so both the spatial-chunk and channel-chunk grid axes are
    # exercised (grid = (2, 2, 2)) and the noise-reuse index_map is validated.
    B3, C3, H3, W3 = 2, 16, 16, 16
    img3 = jax.random.normal(keys[4], (B3, C3, H3, W3), dtype=jnp.float32)
    noi3 = jax.random.normal(keys[5], (B3, 1, H3, W3), dtype=jnp.float32)
    out3 = jax.block_until_ready(noise_injection(img3, w_half, noi3, tile_bytes=4096))
    assert jnp.allclose(out3, img3 + 0.5 * noi3, atol=1e-6), "chunked-grid case mismatch"

    # Case 4: awkward spatial size (6x6 -> HW=36; no foldable g divides C=4) — exercises
    # the lane-padding fallback.
    B4, C4, H4, W4 = 2, 4, 6, 6
    img4 = jax.random.normal(keys[6], (B4, C4, H4, W4), dtype=jnp.float32)
    noi4 = jax.random.normal(keys[7], (B4, 1, H4, W4), dtype=jnp.float32)
    out4 = jax.block_until_ready(noise_injection(img4, w_half, noi4))
    assert jnp.allclose(out4, img4 + 0.5 * noi4, atol=1e-6), "lane-pad case mismatch"

    # Case 5: bf16 image + bf16 noise — kernel computes in bf16 (no f32 round-trip).
    B5, C5, H5, W5 = 2, 8, 16, 16
    img5 = jax.random.normal(keys[8], (B5, C5, H5, W5), jnp.float32).astype(jnp.bfloat16)
    noi5 = jax.random.normal(keys[9], (B5, 1, H5, W5), jnp.float32).astype(jnp.bfloat16)
    out5 = jax.block_until_ready(noise_injection(img5, w_half, noi5))
    ref5 = img5.astype(jnp.float32) + 0.5 * noi5.astype(jnp.float32)
    assert jnp.max(jnp.abs(out5.astype(jnp.float32) - ref5)) < 5e-2, "bf16 case mismatch"

    # Case 6: noise=None path (fresh noise sampled in the wrapper from an explicit key).
    out_gen = jax.block_until_ready(noise_injection(image, w_half, noise=None, key=keys[1]))
    ref_noise = jax.random.normal(keys[1], (B, 1, H, W), dtype=jnp.float32)
    assert jnp.allclose(out_gen, image + 0.5 * ref_noise, atol=1e-6), "noise=None mismatch"

    print("KERNEL_OK")
</pallas_src>

<mosaic_0001>
module attributes {stable_mosaic.version = 11 : i64} {
  func.func @_noise_injection_kernel(%arg0: i32, %arg1: i32, %arg2: i32, %arg3: memref<1xf32, #tpu.memory_space<smem>>, %arg4: memref<1x4x256xf32, #tpu.memory_space<vmem>>, %arg5: memref<1x1x256xf32, #tpu.memory_space<vmem>>, %arg6: memref<1x4x256xf32, #tpu.memory_space<vmem>>) attributes {dimension_semantics = [#tpu.dimension_semantics<parallel>, #tpu.dimension_semantics<parallel>, #tpu.dimension_semantics<parallel>], iteration_bounds = array<i64: 2, 1, 1>, scalar_prefetch = 1 : i64, scratch_operands = 0 : i64, tpu.core_type = #tpu.core_type<tc>, window_params = [{transform_indices = @transform_0, window_bounds = array<i64: 1, 4, 256>}, {transform_indices = @transform_1, window_bounds = array<i64: 1, 1, 256>}, {transform_indices = @transform_2, window_bounds = array<i64: 1, 4, 256>}]} {
    %c0 = arith.constant 0 : index
    %0 = memref.load %arg3[%c0] : memref<1xf32, #tpu.memory_space<smem>>
    %c0_0 = arith.constant 0 : index
    %c0_1 = arith.constant 0 : index
    %c0_2 = arith.constant 0 : index
    %1 = vector.load %arg4[%c0_0, %c0_1, %c0_2] : memref<1x4x256xf32, #tpu.memory_space<vmem>>, vector<1x4x256xf32>
    %c0_3 = arith.constant 0 : index
    %c0_4 = arith.constant 0 : index
    %c0_5 = arith.constant 0 : index
    %2 = vector.load %arg5[%c0_3, %c0_4, %c0_5] : memref<1x1x256xf32, #tpu.memory_space<vmem>>, vector<1x1x256xf32>
    %3 = vector.broadcast %0 : f32 to vector<1x1x256xf32>
    %4 = arith.mulf %3, %2 : vector<1x1x256xf32>
    %5 = vector.broadcast %4 : vector<1x1x256xf32> to vector<1x4x256xf32>
    %6 = arith.addf %1, %5 : vector<1x4x256xf32>
    %c0_6 = arith.constant 0 : index
    %c0_7 = arith.constant 0 : index
    %c0_8 = arith.constant 0 : index
    %7 = vector.load %arg6[%c0_6, %c0_7, %c0_8] : memref<1x4x256xf32, #tpu.memory_space<vmem>>, vector<1x4x256xf32>
    tpu.vector_store %arg6[%c0_6, %c0_7, %c0_8], %6 {strides = array<i32>} : memref<1x4x256xf32, #tpu.memory_space<vmem>>, vector<1x4x256xf32>,
    return
  }
  func.func @transform_0(%arg0: i32, %arg1: i32, %arg2: i32, %arg3: memref<1xf32, #tpu.memory_space<smem>>) -> (i32, i32, i32) {
    %c0_i32 = arith.constant 0 : i32
    return %arg0, %arg2, %arg1 : i32, i32, i32
  }
  func.func @transform_1(%arg0: i32, %arg1: i32, %arg2: i32, %arg3: memref<1xf32, #tpu.memory_space<smem>>) -> (i32, i32, i32) {
    %c0_i32 = arith.constant 0 : i32
    %c0_i32_0 = arith.constant 0 : i32
    return %arg0, %c0_i32, %arg1 : i32, i32, i32
  }
  func.func @transform_2(%arg0: i32, %arg1: i32, %arg2: i32, %arg3: memref<1xf32, #tpu.memory_space<smem>>) -> (i32, i32, i32) {
    %c0_i32 = arith.constant 0 : i32
    return %arg0, %arg2, %arg1 : i32, i32, i32
  }
}

</mosaic_0001>

<llo_original>
// kernel: tpu_custom_call.1
$region0: #{tpu_custom_call.1}
  #allocation0 [shape = 'u32[]', space=smem, size = 0x4, offset = 0x4, fixed_abs, tag = 'smem constant byte address 0x4 - core index']
  #allocation1 [shape = 'u32[72,128]{1,0:T(1,128)}', space=vmem, size = 0x9000, scoped, tag = 'internal scratch']
  #allocation2 [shape = 's32[1]{0}', space=sflag, size = 0x4, scoped, tag = 'scoped memory for tpu_custom_call.1']
  #allocation3 [shape = 'f32[1]{0:T(128)S(6)}', space=smem, size = 0x200, scoped, tag = 'prefetched SMEM operand 0']
  %s0 = inlined_call_operand.<no memory space> [shape: f32[1], index: 0, kind: input, shape index: {}]
  %s1 = inlined_call_operand.hbm [shape: f32[2,4,256], index: 1, kind: input, shape index: {}]
  %s2 = inlined_call_operand.hbm [shape: f32[2,1,256], index: 2, kind: input, shape index: {}]
  %s3 = inlined_call_operand.hbm [shape: f32[2,4,256], index: 3, kind: output, shape index: {}]
  %s4 = sld [smem:[#allocation0]]
  $region49: #{tpu_custom_call.1} parent=0
    _
  %s6 = ssub.s32 1, %s4
  %s7 = scalar_select 0, %s6, %s4
  %8 = sst [smem:[#allocation3]] %s0
  $region1: #{tpu_custom_call.1} parent=0
    #allocation4 [shape = 'u8[8192]{0}', space=vmem, size = 0x2000, scoped, tag = 'input window, operand 1']
    #allocation5 [shape = 's32[2]{0}', space=sflag, size = 0x8, scoped, tag = 'scoped memory for tpu_custom_call.1']
    #allocation6 [shape = 's32[2]{0}', space=sflag, size = 0x8, scoped, tag = 'scoped memory for tpu_custom_call.1']
    #allocation7 [shape = 'u8[2048]{0}', space=vmem, size = 0x800, scoped, tag = 'input window, operand 2']
    #allocation8 [shape = 's32[2]{0}', space=sflag, size = 0x8, scoped, tag = 'scoped memory for tpu_custom_call.1']
    #allocation9 [shape = 'u8[8192]{0}', space=vmem, size = 0x2000, scoped, tag = 'output window, operand 0']
    %9 = vsyncpa [#allocation5], 0
    %s10 = scalar_lea.sflag [#allocation5], 1
    %11 = vsyncpa %s10, 0
    %12 = vsyncpa [#allocation8], 0
    %s13 = scalar_lea.sflag [#allocation8], 1
    %14 = vsyncpa %s13, 0
    %15 = vsyncpa [#allocation6], 0
    %s16 = scalar_lea.sflag [#allocation6], 1
    %17 = vsyncpa %s16, 0
    loop: start=0, step=1, limit=4
    $region2: #{tpu_custom_call.1} parent=1 // loop_pre_header
      _
    $region3: #{tpu_custom_call.1} parent=1 // loop_header
      %s19 = sphi 0, %s23
      %p20 = scmp.ge.s32.totalorder %s19, 4
      %s26 = sphi 0, %s45
      %s27 = sphi 0, %s41
      %s28 = sphi 0, %s37
      %s29 = sphi 0, %s26
      %s30 = sphi 0, %s27
      %s31 = sphi 0, %s28
      %s32 = sphi 0, %s29
      %s33 = sphi 0, %s30
      %s34 = sphi 0, %s31
      %s52 = sphi 0, %s54
      %s55 = sphi 0, %s52
      %s56 = sphi 0, %s55
      %s72 = sphi 0, %s56
      %s80 = sphi 0, %s82
      %s83 = sphi 0, %s80
      %s84 = sphi 0, %s83
      %s100 = sphi 0, %s84
      %s110 = sphi 0, %s112
      %s113 = sphi 0, %s110
      %s114 = sphi 0, %s113
      %s130 = sphi 0, %s114
    $region4: #{tpu_custom_call.1} parent=1 // loop_header_branch
      %22 = sbr.rel (%p20) target = $region8
    $region5: #{tpu_custom_call.1} parent=1 // loop_body
      %s24 = ssub.s32 %s19, 1
      %s25 = ssub.s32 %s19, 2
      %s35 = sadd.s32 1, %s28
      %p36 = scmp.ge.s32.totalorder %s35, 1
      %s37 = scalar_select %p36, 0, %s35
      %s38 = sadd.s32 1, %s27
      %s39 = scalar_select %p36, %s38, %s27
      %p40 = scmp.ge.s32.totalorder %s39, 1
      %s41 = scalar_select %p40, 0, %s39
      %s42 = sadd.s32 1, %s26
      %s43 = scalar_select %p40, %s42, %s26
      %p44 = scmp.ge.s32.totalorder %s43, 2
      %s45 = scalar_select %p44, 0, %s43
      %s46 = ssub.s32 %s26, %s45
      %s47 = ssub.s32 %s28, %s37
      %s48 = sor.u32 %s46, %s47
      %s49 = ssub.s32 %s27, %s41
      %s50 = sor.u32 %s48, %s49
      %p51 = scmp.eq.s32.totalorder %s50, 0
      %s53 = sadd.s32 %s52, 1
      %s54 = scalar_select %p51, %s52, %s53
      %p57 = pneg %p51
      %p58 = scmp.eq.s32.totalorder %s19, 1
      %p59 = por %p57, %p58
      %p60 = scmp.ne.s32.totalorder %s52, %s55
      %p61 = scmp.eq.s32.totalorder %s19, 0
      %p62 = por %p60, %p61
      %p63 = scmp.ne.s32.totalorder %s52, %s55
      %p64 = scmp.eq.s32.totalorder %s24, 1
      %p65 = por %p63, %p64
      %p66 = scmp.ne.s32.totalorder %s55, %s56
      %p67 = scmp.eq.s32.totalorder %s24, 0
      %p68 = por %p66, %p67
      %p69 = scmp.ne.s32.totalorder %s55, %s56
      %p70 = scmp.eq.s32.totalorder %s25, 1
      %p71 = por %p69, %p70
      %p73 = scmp.ne.s32.totalorder %s56, %s72
      %p74 = scmp.eq.s32.totalorder %s25, 0
      %p75 = por %p73, %p74
      %s76 = ssub.s32 %s26, %s45
      %s77 = ssub.s32 %s27, %s41
      %s78 = sor.u32 %s76, %s77
      %p79 = scmp.eq.s32.totalorder %s78, 0
      %s81 = sadd.s32 %s80, 1
      %s82 = scalar_select %p79, %s80, %s81
      %p85 = pneg %p79
      %p86 = scmp.eq.s32.totalorder %s19, 1
      %p87 = por %p85, %p86
      %p88 = scmp.ne.s32.totalorder %s80, %s83
      %p89 = scmp.eq.s32.totalorder %s19, 0
      %p90 = por %p88, %p89
      %p91 = scmp.ne.s32.totalorder %s80, %s83
      %p92 = scmp.eq.s32.totalorder %s24, 1
      %p93 = por %p91, %p92
      %p94 = scmp.ne.s32.totalorder %s83, %s84
      %p95 = scmp.eq.s32.totalorder %s24, 0
      %p96 = por %p94, %p95
      %p97 = scmp.ne.s32.totalorder %s83, %s84
      %p98 = scmp.eq.s32.totalorder %s25, 1
      %p99 = por %p97, %p98
      %p101 = scmp.ne.s32.totalorder %s84, %s100
      %p102 = scmp.eq.s32.totalorder %s25, 0
      %p103 = por %p101, %p102
      %s104 = ssub.s32 %s26, %s45
      %s105 = ssub.s32 %s28, %s37
      %s106 = sor.u32 %s104, %s105
      %s107 = ssub.s32 %s27, %s41
      %s108 = sor.u32 %s106, %s107
      %p109 = scmp.eq.s32.totalorder %s108, 0
      %s111 = sadd.s32 %s110, 1
      %s112 = scalar_select %p109, %s110, %s111
      %p115 = pneg %p109
      %p116 = scmp.eq.s32.totalorder %s19, 1
      %p117 = por %p115, %p116
      %p118 = scmp.ne.s32.totalorder %s110, %s113
      %p119 = scmp.eq.s32.totalorder %s19, 0
      %p120 = por %p118, %p119
      %p121 = scmp.ne.s32.totalorder %s110, %s113
      %p122 = scmp.eq.s32.totalorder %s24, 1
      %p123 = por %p121, %p122
      %p124 = scmp.ne.s32.totalorder %s113, %s114
      %p125 = scmp.eq.s32.totalorder %s24, 0
      %p126 = por %p124, %p125
      %p127 = scmp.ne.s32.totalorder %s113, %s114
      %p128 = scmp.eq.s32.totalorder %s25, 1
      %p129 = por %p127, %p128
      %p131 = scmp.ne.s32.totalorder %s114, %s130
      %p132 = scmp.eq.s32.totalorder %s25, 0
      %p133 = por %p131, %p132
      %p134 = scmp.le.s32.totalorder 1, %s19
      %p135 = scmp.lt.s32.totalorder %s19, 3
      %p136 = pnand %p134, %p135
      %p137 = pneg %p136
      // Predicated region
      $region9: #{tpu_custom_call.1} parent=5 // pred_check
        _
      $region10: #{tpu_custom_call.1} parent=5 // pred_check_branch
        %139 = sbr.rel (%p136) target = $region12
      $region11: #{tpu_custom_call.1} parent=5 // pred_region
        %s140 = ssub.s32 %s19, 1
      $region12: #{tpu_custom_call.1} parent=5 // pred_fallthru
        _
      %p141 = scmp.lt.s32.totalorder %s19, 2
      // Predicated region
      $region13: #{tpu_custom_call.1} parent=5 // pred_check
        %p142 = pneg %p141
      $region14: #{tpu_custom_call.1} parent=5 // pred_check_branch
        %144 = sbr.rel (%p142) target = $region16
      $region15: #{tpu_custom_call.1} parent=5 // pred_region
        // Predicated region
        $region17: #{tpu_custom_call.1} parent=15 // pred_check
          %p145 = pneg %p62
        $region18: #{tpu_custom_call.1} parent=15 // pred_check_branch
          %147 = sbr.rel (%p145) target = $region20
        $region19: #{tpu_custom_call.1} parent=15 // pred_region
          %s148 = sand.u32 %s52, 1
          %s149 = scalar_lea.sflag [#allocation5], %s148
          %s150 = sand.u32 %s52, 1
          %s151 = smul.addr %s150, 8
          %s152 = scalar_lea.vmem [#allocation4], %s151
          %s153 = smul.u32 2, %s27
          %155 = vsyncadd %s149, 0
          %s156 = smul.addr %s28, 2
          %s157 = sadd.s32 %s153, %s156
          %s158 = smul.addr %s26, 2
          %s159 = sadd.s32 %s157, %s158
          %s160 = smul.addr %s159, 4
          %s161 = scalar_lea.hbm %s1, %s160
          %s163 = sshll.u32 %s161, 4
          %s164 = int_to_ptr.hbm [resolvable:$true] %s163
          %s165 = sshll.u32 %s152, 4
          %s166 = int_to_ptr.vmem [resolvable:$true] %s165
          %168 = dma.hbm_to_vmem [thread:$0]  %s164, 128, %s166, %s149
        $region20: #{tpu_custom_call.1} parent=15 // pred_fallthru
          _
        // Predicated region
        $region21: #{tpu_custom_call.1} parent=15 // pred_check
          %p169 = pneg %p90
        $region22: #{tpu_custom_call.1} parent=15 // pred_check_branch
          %171 = sbr.rel (%p169) target = $region24
        $region23: #{tpu_custom_call.1} parent=15 // pred_region
          %s172 = sand.u32 %s80, 1
          %s173 = scalar_lea.sflag [#allocation8], %s172
          %s174 = sand.u32 %s80, 1
          %s175 = smul.addr %s174, 2
          %s176 = scalar_lea.vmem [#allocation7], %s175
          %s177 = smul.u32 2, %s27
          %179 = vsyncadd %s173, 0
          %s180 = smul.addr %s26, 2
          %s181 = sadd.s32 %s177, %s180
          %s182 = scalar_lea.hbm %s2, %s181
          %s184 = sshll.u32 %s182, 4
          %s185 = int_to_ptr.hbm [resolvable:$true] %s184
          %s186 = sshll.u32 %s176, 4
          %s187 = int_to_ptr.vmem [resolvable:$true] %s186
          %189 = dma.hbm_to_vmem [thread:$0]  %s185, 32, %s187, %s173
        $region24: #{tpu_custom_call.1} parent=15 // pred_fallthru
          _
      $region16: #{tpu_custom_call.1} parent=5 // pred_fallthru
        _
      %p190 = scmp.le.s32.totalorder 1, %s19
      %p191 = scmp.lt.s32.totalorder %s19, 3
      %p192 = pnand %p190, %p191
      %p193 = pneg %p192
      // Predicated region
      $region25: #{tpu_custom_call.1} parent=5 // pred_check
        _
      $region26: #{tpu_custom_call.1} parent=5 // pred_check_branch
        %195 = sbr.rel (%p192) target = $region28
      $region27: #{tpu_custom_call.1} parent=5 // pred_region
        %s196 = ssub.s32 %s19, 1
        %s197 = sand.u32 %s55, 1
        %s198 = scalar_lea.sflag [#allocation5], %s197
        %s199 = sand.u32 %s55, 1
        %s200 = smul.addr %s199, 8
        %s201 = scalar_lea.vmem [#allocation4], %s200
        // Predicated region
        $region29: #{tpu_custom_call.1} parent=27 // pred_check
          %p202 = pneg %p68
        $region30: #{tpu_custom_call.1} parent=27 // pred_check_branch
          %204 = sbr.rel (%p202) target = $region32
        $region31: #{tpu_custom_call.1} parent=27 // pred_region
          %206 = dma.done %s198, 128
        $region32: #{tpu_custom_call.1} parent=27 // pred_fallthru
          _
        %s207 = sand.u32 %s83, 1
        %s208 = scalar_lea.sflag [#allocation8], %s207
        %s209 = sand.u32 %s83, 1
        %s210 = smul.addr %s209, 2
        %s211 = scalar_lea.vmem [#allocation7], %s210
        // Predicated region
        $region33: #{tpu_custom_call.1} parent=27 // pred_check
          %p212 = pneg %p96
        $region34: #{tpu_custom_call.1} parent=27 // pred_check_branch
          %214 = sbr.rel (%p212) target = $region36
        $region35: #{tpu_custom_call.1} parent=27 // pred_region
          %216 = dma.done %s208, 32
        $region36: #{tpu_custom_call.1} parent=27 // pred_fallthru
          _
        %s217 = sand.u32 %s55, 1
        %s218 = scalar_lea.sflag [#allocation5], %s217
        %s219 = sand.u32 %s55, 1
        %s220 = smul.addr %s219, 8
        %s221 = scalar_lea.vmem [#allocation4], %s220
        %p222 = pneg %p68
        %p223 = pneg %p65
        %s224 = sand.u32 %s83, 1
        %s225 = scalar_lea.sflag [#allocation8], %s224
        %s226 = sand.u32 %s83, 1
        %s227 = smul.addr %s226, 2
        %s228 = scalar_lea.vmem [#allocation7], %s227
        %p229 = pneg %p96
        %p230 = pneg %p93
        %p231 = pneg %p126
        %p232 = pneg %p123
        %s233 = sand.u32 %s113, 1
        %s234 = scalar_lea.sflag [#allocation6], %s233
        %s235 = sand.u32 %s113, 1
        %s236 = smul.addr %s235, 8
        %s237 = scalar_lea.vmem [#allocation9], %s236
        %s238 = smul.u32 2, %s30
        %s239 = smul.u32 2, %s30
        %s240 = smul.u32 2, %s30
        %s241 = sld [smem:[#allocation3]]
        %v242 = vld [vmem:[%s201] sm:$0xff]
        %v243 = vld [vmem:[%s211] sm:$0x3]
        %v244 = vstv %s241
        %v245 = vmul.f32 %v244, %v243
        %v247 = vperm.slane %v245, 0
        %v248 = vperm.slane %v245, 1
        %v249 = vrot.slane %v248, 4
        %vm250 = vcmask 1043456
        %v251 = vsel %vm250, %v247, %v249
        %v253 = vadd.f32 %v242, %v251
        %254 = vst [vmem:[%s237] sm:$0xff] %v253
        %s255 = sand.u32 %s113, 1
        %s256 = scalar_lea.sflag [#allocation6], %s255
        %s257 = sand.u32 %s113, 1
        %s258 = smul.addr %s257, 8
        %s259 = scalar_lea.vmem [#allocation9], %s258
        // Predicated region
        $region37: #{tpu_custom_call.1} parent=27 // pred_check
          %p260 = pneg %p123
        $region38: #{tpu_custom_call.1} parent=27 // pred_check_branch
          %262 = sbr.rel (%p260) target = $region40
        $region39: #{tpu_custom_call.1} parent=27 // pred_region
          %s263 = smul.u32 2, %s30
          %265 = vsyncadd %s256, 0
          %s266 = smul.addr %s31, 2
          %s267 = sadd.s32 %s263, %s266
          %s268 = smul.addr %s29, 2
          %s269 = sadd.s32 %s267, %s268
          %s270 = smul.addr %s269, 4
          %s271 = scalar_lea.hbm %s3, %s270
          %s273 = sshll.u32 %s259, 4
          %s274 = int_to_ptr.vmem [resolvable:$true] %s273
          %s275 = sshll.u32 %s271, 4
          %s276 = int_to_ptr.hbm [resolvable:$true] %s275
          %278 = dma.vmem_to_hbm [thread:$0]  %s274, 128, %s276, %s256
        $region40: #{tpu_custom_call.1} parent=27 // pred_fallthru
          _
      $region28: #{tpu_custom_call.1} parent=5 // pred_fallthru
        _
      %p279 = scmp.le.s32.totalorder 2, %s19
      // Predicated region
      $region41: #{tpu_custom_call.1} parent=5 // pred_check
        %p280 = pneg %p279
      $region42: #{tpu_custom_call.1} parent=5 // pred_check_branch
        %282 = sbr.rel (%p280) target = $region44
      $region43: #{tpu_custom_call.1} parent=5 // pred_region
        %s283 = ssub.s32 %s19, 2
        // Predicated region
        $region45: #{tpu_custom_call.1} parent=43 // pred_check
          %p284 = pneg %p129
        $region46: #{tpu_custom_call.1} parent=43 // pred_check_branch
          %286 = sbr.rel (%p284) target = $region48
        $region47: #{tpu_custom_call.1} parent=43 // pred_region
          %s287 = sand.u32 %s114, 1
          %s288 = scalar_lea.sflag [#allocation6], %s287
          %s289 = sand.u32 %s114, 1
          %s290 = smul.addr %s289, 8
          %s291 = scalar_lea.vmem [#allocation9], %s290
          %293 = dma.done %s288, 128
        $region48: #{tpu_custom_call.1} parent=43 // pred_fallthru
          _
      $region44: #{tpu_custom_call.1} parent=5 // pred_fallthru
        _
    $region6: #{tpu_custom_call.1} parent=1 // loop_footer
      %s23 = sadd.s32 1, %s19
    $region7: #{tpu_custom_call.1} parent=1 // loop_footer_branch
      %18 = sbr.rel target = $region3
    $region8: #{tpu_custom_call.1} parent=1 // loop_exit
      _
    %294 = vsyncpa [#allocation5], 1
    %s295 = scalar_lea.sflag [#allocation5], 1
    %296 = vsyncpa %s295, 1
    %297 = vsyncpa [#allocation8], 1
    %s298 = scalar_lea.sflag [#allocation8], 1
    %299 = vsyncpa %s298, 1
    %300 = vsyncpa [#allocation6], 1
    %s301 = scalar_lea.sflag [#allocation6], 1
    %302 = vsyncpa %s301, 1

</llo_original>
